<compile_context>
chip_gen: v6e
topology: v6e:2x2x1
jax: 0.10.0
libtpu: 0.0.40
codegen_flags: <defaults>
</compile_context>

<pallas_src>
import functools

import jax
import jax.numpy as jnp
from jax.experimental import pallas as pl
from jax.experimental.pallas import tpu as pltpu


def _round_up(x, m):
    return ((x + m - 1) // m) * m


def _vmem_capacity_bytes():
    """Physical VMEM per core; conservative fallback if the query fails."""
    try:
        info = pltpu.get_tpu_info()
        cap = getattr(info, "vmem_capacity_bytes", None)
        if cap:
            return int(cap)
    except Exception:
        pass
    return 64 << 20  # v7x per-TensorCore size (most conservative real chip)


def _chip_has_bf16_vpu():
    """True on v6e / v7x (bf16 VPU+EUP); False on v5e and unknown chips."""
    try:
        kind = jax.devices()[0].device_kind.lower()
        return ("v6" in kind) or ("v7" in kind)
    except Exception:
        return False


# --------------------------------------------------------------------------
# Kernel
# --------------------------------------------------------------------------
def lstm_cell_kernel(xh_ref, w_ref, b_ref, c_ref, h_out_ref, c_out_ref,
                     acc_ref, *, bf16_epilogue):
    """One (batch-tile, hidden-tile, k-tile) grid step of the fused LSTM cell.

    Grid = (BP//tb, HP//th, KP//tk); axis 2 (k) is the contraction axis.
    acc_ref: (tb, 4*th) f32 accumulator; its N-block holds [i | f | g | o]
    pre-activations for the current th-wide hidden slice.
    """
    k = pl.program_id(2)
    nk = pl.num_programs(2)

    # Single fused MXU contraction for this (k, n) tile.
    psum = jnp.dot(xh_ref[...], w_ref[...], preferred_element_type=jnp.float32)

    @pl.when(k == 0)
    def _():
        # Bias folded into the first partial sum: no separate accumulator
        # init pass (saves a full (tb, tn) f32 store+load per batch tile).
        acc_ref[...] = psum + b_ref[...].astype(jnp.float32)

    @pl.when(k > 0)
    def _():
        acc_ref[...] += psum

    @pl.when(k == nk - 1)
    def _():
        th = h_out_ref.shape[-1]
        z = acc_ref[...]
        # bf16 epilogue on chips with a bf16 VPU/EUP (v6e/v7x); f32 elsewhere.
        gate_dtype = jnp.bfloat16 if bf16_epilogue else jnp.float32
        zg = z.astype(gate_dtype)
        # Gate slices are 128-lane aligned (th is a multiple of 128).
        i_t = jax.nn.sigmoid(zg[:, 0 * th:1 * th]).astype(jnp.float32)
        f_t = jax.nn.sigmoid(zg[:, 1 * th:2 * th]).astype(jnp.float32)
        g_t = jnp.tanh(zg[:, 2 * th:3 * th]).astype(jnp.float32)
        o_t = jax.nn.sigmoid(zg[:, 3 * th:4 * th]).astype(jnp.float32)

        # Cell-state math always in f32.
        c_prev = c_ref[...].astype(jnp.float32)
        c_t = f_t * c_prev + i_t * g_t
        h_t = jnp.tanh(c_t) * o_t

        h_out_ref[...] = h_t.astype(h_out_ref.dtype)
        c_out_ref[...] = c_t.astype(c_out_ref.dtype)


# --------------------------------------------------------------------------
# Parameter packing (gate-interleaved per hidden tile, done once in JAX)
# --------------------------------------------------------------------------
def pack_params(p, HP, KP, th, matmul_dtype):
    """Pack 8 weights / 4 biases into one lane-dense, gate-interleaved weight.

    Column block ni (width 4*th) holds [W_i | W_f | W_g | W_o] columns for the
    hidden slice [ni*th, (ni+1)*th); rows are [x features ; h features],
    zero-padded to KP.  Bias is packed with the same column layout.
    """
    I = p["W_ii"].shape[1]
    H = p["W_ii"].shape[0]
    n_tiles = HP // th
    gates = [("W_ii", "W_hi", "b_i"),
             ("W_if", "W_hf", "b_f"),
             ("W_ig", "W_hg", "b_g"),
             ("W_io", "W_ho", "b_o")]
    w_g, b_g = [], []
    for wx_name, wh_name, b_name in gates:
        wg = jnp.concatenate([p[wx_name].T, p[wh_name].T], axis=0)   # (I+H, H)
        wg = jnp.pad(wg, ((0, KP - (I + H)), (0, HP - H)))            # (KP, HP)
        w_g.append(wg.reshape(KP, n_tiles, th))
        b_g.append(jnp.pad(p[b_name], (0, HP - H)).reshape(n_tiles, th))
    w = jnp.stack(w_g, axis=2).reshape(KP, n_tiles * 4 * th).astype(matmul_dtype)
    b = jnp.stack(b_g, axis=1).reshape(1, n_tiles * 4 * th).astype(jnp.float32)
    return w, b


# --------------------------------------------------------------------------
# Wrapper
# --------------------------------------------------------------------------
def lstm_cell_pallas(x, h_prev, c_prev, params, *, matmul_dtype=jnp.bfloat16):
    B, I = x.shape
    H = h_prev.shape[-1]

    HP = _round_up(H, 128)
    KP = _round_up(I + H, 128)
    N = 4 * HP

    # ---- tile selection -------------------------------------------------
    # Hidden tile th (per gate); feature tile tn = 4*th bounds VMEM use
    # independently of H and gives a second "parallel" grid axis.
    if HP % 512 == 0:
        th = 512
    elif HP % 256 == 0:
        th = 256
    else:
        th = 128
    tn = 4 * th

    # Batch tile: never collapse to tiny tiles; pad the batch instead so the
    # packed weights are streamed at most ceil(B/256) times.
    if B <= 256:
        BP = _round_up(B, 8)
        tb = BP                      # single batch tile
    else:
        BP = _round_up(B, 256)
        tb = 256                     # full MXU rows on v6e/v7x

    # Contraction tile.
    tk = 128
    for cand in (512, 256, 128):
        if KP % cand == 0:
            tk = cand
            break
    # Keep >= 2 pipeline steps when the grid would otherwise be (1,1,1).
    if BP == tb and HP == th and KP == tk and KP >= 256:
        tk = 256 if (KP % 256 == 0 and KP > 256) else 128

    grid = (BP // tb, HP // th, KP // tk)

    # ---- operand packing -------------------------------------------------
    w, b = pack_params(params, HP, KP, th, matmul_dtype)

    # TODO(synk): pass x and h_prev separately (two accumulating dots) to
    # avoid materializing the fused activation copy; prerequisite for fusing
    # the recurrence in-kernel.
    xh = jnp.concatenate([x, h_prev], axis=1).astype(matmul_dtype)
    xh = jnp.pad(xh, ((0, BP - B), (0, KP - (I + H))))
    c_pad = jnp.pad(c_prev.astype(jnp.float32), ((0, BP - B), (0, HP - H)))

    h_dtype = matmul_dtype           # bf16 h writeback on the fast path
    bf16_epilogue = (jnp.dtype(matmul_dtype) == jnp.dtype(jnp.bfloat16)
                     and _chip_has_bf16_vpu())

    # ---- VMEM budget (double-buffered tiles + accumulator) ---------------
    msize = jnp.dtype(matmul_dtype).itemsize
    h_isize = jnp.dtype(h_dtype).itemsize
    footprint = (2 * tb * tk * msize        # xh tiles
                 + 2 * tk * tn * msize      # weight tiles
                 + 2 * tn * 4               # bias
                 + 2 * tb * th * 4          # c_prev tiles
                 + 2 * tb * th * h_isize    # h_t tiles
                 + 2 * tb * th * 4          # c_t tiles
                 + tb * tn * 4)             # accumulator
    vmem_cap = _vmem_capacity_bytes()
    vmem_limit = int(min(max(2 * footprint + (4 << 20), 32 << 20),
                         vmem_cap - (8 << 20)))

    nb = BP // tb
    cost = pl.CostEstimate(
        flops=2 * BP * KP * N,
        transcendentals=5 * BP * HP,
        bytes_accessed=int(BP * KP * msize          # activations
                           + nb * KP * N * msize    # weights (per batch tile)
                           + N * 4                  # bias
                           + BP * HP * (4 + 4 + h_isize)),  # c in/out + h out
    )

    kernel = functools.partial(lstm_cell_kernel, bf16_epilogue=bf16_epilogue)

    h_pad, c_out_pad = pl.pallas_call(
        kernel,
        out_shape=(
            jax.ShapeDtypeStruct((BP, HP), h_dtype),
            jax.ShapeDtypeStruct((BP, HP), jnp.float32),
        ),
        grid_spec=pltpu.PrefetchScalarGridSpec(
            num_scalar_prefetch=0,
            grid=grid,
            in_specs=[
                pl.BlockSpec((tb, tk), lambda bi, ni, ki: (bi, ki)),   # xh
                pl.BlockSpec((tk, tn), lambda bi, ni, ki: (ki, ni)),   # weights
                pl.BlockSpec((1, tn), lambda bi, ni, ki: (0, ni)),     # bias
                pl.BlockSpec((tb, th), lambda bi, ni, ki: (bi, ni)),   # c_prev
            ],
            out_specs=(
                pl.BlockSpec((tb, th), lambda bi, ni, ki: (bi, ni)),   # h_t
                pl.BlockSpec((tb, th), lambda bi, ni, ki: (bi, ni)),   # c_t
            ),
            scratch_shapes=[pltpu.VMEM((tb, tn), jnp.float32)],
        ),
        compiler_params=pltpu.CompilerParams(
            dimension_semantics=("parallel", "parallel", "arbitrary"),
            vmem_limit_bytes=vmem_limit,
        ),
        cost_estimate=cost,
    )(xh, w, b, c_pad)

    h_t = h_pad[:B, :H]
    c_t = c_out_pad[:B, :H]
    # Match the PyTorch module's return signature: (h_t, (h_t, c_t))
    return h_t, (h_t, c_t)


# --------------------------------------------------------------------------
# Reference + init (mirrors the PyTorch module)
# --------------------------------------------------------------------------
def init_params(key, input_size, hidden_size):
    """Deterministic uniform(-0.1, 0.1) init mirroring the module's shapes."""
    names = ["W_ii", "W_hi", "b_i",
             "W_if", "W_hf", "b_f",
             "W_ig", "W_hg", "b_g",
             "W_io", "W_ho", "b_o"]
    shapes = [(hidden_size, input_size), (hidden_size, hidden_size),
              (hidden_size,)] * 4
    keys = jax.random.split(key, len(names))
    params = {}
    for name, shape, k in zip(names, shapes, keys):
        params[name] = jax.random.uniform(k, shape, jnp.float32, -0.1, 0.1)
    return params


def lstm_cell_reference(x, h_prev, c_prev, p):
    """Pure-JAX reference matching the PyTorch forward exactly."""
    i_t = jax.nn.sigmoid(x @ p["W_ii"].T + h_prev @ p["W_hi"].T + p["b_i"])
    f_t = jax.nn.sigmoid(x @ p["W_if"].T + h_prev @ p["W_hf"].T + p["b_f"])
    g_t = jnp.tanh(x @ p["W_ig"].T + h_prev @ p["W_hg"].T + p["b_g"])
    o_t = jax.nn.sigmoid(x @ p["W_io"].T + h_prev @ p["W_ho"].T + p["b_o"])
    c_t = f_t * c_prev + i_t * g_t
    h_t = jnp.tanh(c_t) * o_t
    return h_t, c_t


if __name__ == "__main__":
    input_size = 16
    hidden_size = 32
    batch = 2

    key = jax.random.PRNGKey(0)
    k_params, k_x, k_h, k_c = jax.random.split(key, 4)

    params = init_params(k_params, input_size, hidden_size)

    x = jax.random.normal(k_x, (batch, input_size), jnp.float32)
    h_prev = jax.random.normal(k_h, (batch, hidden_size), jnp.float32)
    c_prev = jax.random.normal(k_c, (batch, hidden_size), jnp.float32)

    h_ref, c_ref = lstm_cell_reference(x, h_prev, c_prev, params)

    # f32 matmul + f32 epilogue path: tight check against the reference.
    h_t, (h_t2, c_t) = lstm_cell_pallas(
        x, h_prev, c_prev, params, matmul_dtype=jnp.float32)
    jax.block_until_ready((h_t, c_t))
    assert jnp.allclose(h_t.astype(jnp.float32), h_ref, atol=5e-5, rtol=5e-5), \
        "f32 h_t mismatch"
    assert jnp.allclose(c_t, c_ref, atol=5e-5, rtol=5e-5), "f32 c_t mismatch"

    # bf16 matmul (+ bf16 epilogue on v6e/v7x, bf16 h writeback): looser tol.
    h_bf, (_, c_bf) = lstm_cell_pallas(
        x, h_prev, c_prev, params, matmul_dtype=jnp.bfloat16)
    jax.block_until_ready((h_bf, c_bf))
    assert jnp.allclose(h_bf.astype(jnp.float32), h_ref, atol=3e-2, rtol=3e-2), \
        "bf16 h_t mismatch"
    assert jnp.allclose(c_bf, c_ref, atol=3e-2, rtol=3e-2), "bf16 c_t mismatch"

    print("KERNEL_OK")
</pallas_src>

<mosaic_0001>
module attributes {stable_mosaic.version = 11 : i64} {
  func.func @lstm_cell_kernel(%arg0: i32, %arg1: i32, %arg2: i32, %arg3: memref<8x128xf32, #tpu.memory_space<vmem>>, %arg4: memref<128x512xf32, #tpu.memory_space<vmem>>, %arg5: memref<1x512xf32, #tpu.memory_space<vmem>>, %arg6: memref<8x128xf32, #tpu.memory_space<vmem>>, %arg7: memref<8x128xf32, #tpu.memory_space<vmem>>, %arg8: memref<8x128xf32, #tpu.memory_space<vmem>>, %arg9: memref<8x512xf32, #tpu.memory_space<vmem>>) attributes {dimension_semantics = [#tpu.dimension_semantics<parallel>, #tpu.dimension_semantics<parallel>, #tpu.dimension_semantics<arbitrary>], iteration_bounds = array<i64: 1, 1, 1>, scalar_prefetch = 0 : i64, scratch_operands = 1 : i64, tpu.core_type = #tpu.core_type<tc>, window_params = [{transform_indices = @transform_0, window_bounds = array<i64: 8, 128>}, {transform_indices = @transform_1, window_bounds = array<i64: 128, 512>}, {transform_indices = @transform_2, window_bounds = array<i64: 1, 512>}, {transform_indices = @transform_3, window_bounds = array<i64: 8, 128>}, {transform_indices = @transform_4, window_bounds = array<i64: 8, 128>}, {transform_indices = @transform_5, window_bounds = array<i64: 8, 128>}]} {
    %c0 = arith.constant 0 : index
    %c0_0 = arith.constant 0 : index
    %0 = vector.load %arg3[%c0, %c0_0] : memref<8x128xf32, #tpu.memory_space<vmem>>, vector<8x128xf32>
    %c0_1 = arith.constant 0 : index
    %c0_2 = arith.constant 0 : index
    %1 = vector.load %arg4[%c0_1, %c0_2] : memref<128x512xf32, #tpu.memory_space<vmem>>, vector<128x512xf32>
    %cst = arith.constant dense<0.000000e+00> : vector<8x512xf32>
    %2 = tpu.matmul %0, %1, %cst {dimension_numbers = #tpu.dot_dimension_numbers<[1], [0], [0], [1], [0, 0, 1, 1], [], []>} : vector<8x128xf32>, vector<128x512xf32>, vector<8x512xf32> -> vector<8x512xf32>
    %c0_i32 = arith.constant 0 : i32
    %3 = arith.cmpi eq, %arg2, %c0_i32 : i32
    %4 = arith.extui %3 : i1 to i32
    %c0_i32_3 = arith.constant 0 : i32
    %5 = arith.cmpi ne, %4, %c0_i32_3 : i32
    scf.if %5 {
      %c0_8 = arith.constant 0 : index
      %c0_9 = arith.constant 0 : index
      %12 = vector.load %arg5[%c0_8, %c0_9] : memref<1x512xf32, #tpu.memory_space<vmem>>, vector<1x512xf32>
      %13 = vector.broadcast %12 : vector<1x512xf32> to vector<8x512xf32>
      %14 = arith.addf %2, %13 : vector<8x512xf32>
      %c0_10 = arith.constant 0 : index
      %c0_11 = arith.constant 0 : index
      %15 = vector.load %arg9[%c0_10, %c0_11] : memref<8x512xf32, #tpu.memory_space<vmem>>, vector<8x512xf32>
      tpu.vector_store %arg9[%c0_10, %c0_11], %14 {strides = array<i32>} : memref<8x512xf32, #tpu.memory_space<vmem>>, vector<8x512xf32>,
    } else {
    }
    %c0_i32_4 = arith.constant 0 : i32
    %6 = arith.cmpi sgt, %arg2, %c0_i32_4 : i32
    %7 = arith.extui %6 : i1 to i32
    %c0_i32_5 = arith.constant 0 : i32
    %8 = arith.cmpi ne, %7, %c0_i32_5 : i32
    scf.if %8 {
      %c0_8 = arith.constant 0 : index
      %c0_9 = arith.constant 0 : index
      %12 = vector.load %arg9[%c0_8, %c0_9] : memref<8x512xf32, #tpu.memory_space<vmem>>, vector<8x512xf32>
      %13 = arith.addf %12, %2 : vector<8x512xf32>
      %c0_10 = arith.constant 0 : index
      %c0_11 = arith.constant 0 : index
      %14 = vector.load %arg9[%c0_10, %c0_11] : memref<8x512xf32, #tpu.memory_space<vmem>>, vector<8x512xf32>
      tpu.vector_store %arg9[%c0_10, %c0_11], %13 {strides = array<i32>} : memref<8x512xf32, #tpu.memory_space<vmem>>, vector<8x512xf32>,
    } else {
    }
    %c0_i32_6 = arith.constant 0 : i32
    %9 = arith.cmpi eq, %arg2, %c0_i32_6 : i32
    %10 = arith.extui %9 : i1 to i32
    %c0_i32_7 = arith.constant 0 : i32
    %11 = arith.cmpi ne, %10, %c0_i32_7 : i32
    scf.if %11 {
      %c0_8 = arith.constant 0 : index
      %c0_9 = arith.constant 0 : index
      %12 = vector.load %arg9[%c0_8, %c0_9] : memref<8x512xf32, #tpu.memory_space<vmem>>, vector<8x512xf32>
      %13 = vector.extract_strided_slice %12 {offsets = [0, 0], sizes = [8, 128], strides = [1, 1]} : vector<8x512xf32> to vector<8x128xf32>
      %14 = arith.negf %13 : vector<8x128xf32>
      %15 = math.exp %14 : vector<8x128xf32>
      %cst_10 = arith.constant 1.000000e+00 : f32
      %16 = vector.broadcast %cst_10 : f32 to vector<8x128xf32>
      %17 = arith.addf %16, %15 : vector<8x128xf32>
      %18 = arith.divf %16, %17 : vector<8x128xf32>
      %19 = vector.extract_strided_slice %12 {offsets = [0, 128], sizes = [8, 128], strides = [1, 1]} : vector<8x512xf32> to vector<8x128xf32>
      %20 = arith.negf %19 : vector<8x128xf32>
      %21 = math.exp %20 : vector<8x128xf32>
      %cst_11 = arith.constant 1.000000e+00 : f32
      %22 = vector.broadcast %cst_11 : f32 to vector<8x128xf32>
      %23 = arith.addf %22, %21 : vector<8x128xf32>
      %24 = arith.divf %22, %23 : vector<8x128xf32>
      %25 = vector.extract_strided_slice %12 {offsets = [0, 256], sizes = [8, 128], strides = [1, 1]} : vector<8x512xf32> to vector<8x128xf32>
      %26 = math.tanh %25 : vector<8x128xf32>
      %27 = vector.extract_strided_slice %12 {offsets = [0, 384], sizes = [8, 128], strides = [1, 1]} : vector<8x512xf32> to vector<8x128xf32>
      %28 = arith.negf %27 : vector<8x128xf32>
      %29 = math.exp %28 : vector<8x128xf32>
      %cst_12 = arith.constant 1.000000e+00 : f32
      %30 = vector.broadcast %cst_12 : f32 to vector<8x128xf32>
      %31 = arith.addf %30, %29 : vector<8x128xf32>
      %32 = arith.divf %30, %31 : vector<8x128xf32>
      %c0_13 = arith.constant 0 : index
      %c0_14 = arith.constant 0 : index
      %33 = vector.load %arg6[%c0_13, %c0_14] : memref<8x128xf32, #tpu.memory_space<vmem>>, vector<8x128xf32>
      %34 = arith.mulf %24, %33 : vector<8x128xf32>
      %35 = arith.mulf %18, %26 : vector<8x128xf32>
      %36 = arith.addf %34, %35 : vector<8x128xf32>
      %37 = math.tanh %36 : vector<8x128xf32>
      %38 = arith.mulf %37, %32 : vector<8x128xf32>
      %c0_15 = arith.constant 0 : index
      %c0_16 = arith.constant 0 : index
      %39 = vector.load %arg7[%c0_15, %c0_16] : memref<8x128xf32, #tpu.memory_space<vmem>>, vector<8x128xf32>
      tpu.vector_store %arg7[%c0_15, %c0_16], %38 {strides = array<i32>} : memref<8x128xf32, #tpu.memory_space<vmem>>, vector<8x128xf32>,
      %c0_17 = arith.constant 0 : index
      %c0_18 = arith.constant 0 : index
      %40 = vector.load %arg8[%c0_17, %c0_18] : memref<8x128xf32, #tpu.memory_space<vmem>>, vector<8x128xf32>
      tpu.vector_store %arg8[%c0_17, %c0_18], %36 {strides = array<i32>} : memref<8x128xf32, #tpu.memory_space<vmem>>, vector<8x128xf32>,
    } else {
    }
    return
  }
  func.func @transform_0(%arg0: i32, %arg1: i32, %arg2: i32) -> (i32, i32) {
    %c0_i32 = arith.constant 0 : i32
    return %arg0, %arg2 : i32, i32
  }
  func.func @transform_1(%arg0: i32, %arg1: i32, %arg2: i32) -> (i32, i32) {
    %c0_i32 = arith.constant 0 : i32
    return %arg2, %arg1 : i32, i32
  }
  func.func @transform_2(%arg0: i32, %arg1: i32, %arg2: i32) -> (i32, i32) {
    %c0_i32 = arith.constant 0 : i32
    %c0_i32_0 = arith.constant 0 : i32
    return %c0_i32, %arg1 : i32, i32
  }
  func.func @transform_3(%arg0: i32, %arg1: i32, %arg2: i32) -> (i32, i32) {
    %c0_i32 = arith.constant 0 : i32
    return %arg0, %arg1 : i32, i32
  }
  func.func @transform_4(%arg0: i32, %arg1: i32, %arg2: i32) -> (i32, i32) {
    %c0_i32 = arith.constant 0 : i32
    return %arg0, %arg1 : i32, i32
  }
  func.func @transform_5(%arg0: i32, %arg1: i32, %arg2: i32) -> (i32, i32) {
    %c0_i32 = arith.constant 0 : i32
    return %arg0, %arg1 : i32, i32
  }
}

</mosaic_0001>

<llo_original>
// kernel: tpu_custom_call.1
$region0: #{tpu_custom_call.1}
  #allocation0 [shape = 'u32[]', space=smem, size = 0x4, offset = 0x4, fixed_abs, tag = 'smem constant byte address 0x4 - core index']
  #allocation1 [shape = 'u32[144,128]{1,0:T(1,128)}', space=vmem, size = 0x12000, scoped, tag = 'internal scratch']
  #allocation2 [shape = 'f32[8,512]{1,0:T(8,128)}', space=vmem, size = 0x4000, scoped, tag = 'scratch operand']
  %s0 = inlined_call_operand.hbm [shape: f32[8,128], index: 0, kind: input, shape index: {}]
  %s1 = inlined_call_operand.hbm [shape: f32[128,512], index: 1, kind: input, shape index: {}]
  %s2 = inlined_call_operand.hbm [shape: f32[1,512], index: 2, kind: input, shape index: {}]
  %s3 = inlined_call_operand.hbm [shape: f32[8,128], index: 3, kind: input, shape index: {}]
  %s4 = inlined_call_operand.hbm [shape: f32[8,128], index: 4, kind: output, shape index: {0}]
  %s5 = inlined_call_operand.hbm [shape: f32[8,128], index: 5, kind: output, shape index: {1}]
  %6 = xla_tuple %s4, %s5
  %s7 = sld [smem:[#allocation0]]
  $region62: #{tpu_custom_call.1} parent=0
    _
  %s9 = ssub.s32 1, %s7
  %s10 = scalar_select 0, %s9, %s7
  $region1: #{tpu_custom_call.1} parent=0
    #allocation3 [shape = 'u8[4096]{0}', space=vmem, size = 0x1000, scoped, tag = 'input window, operand 0, single buffered']
    #allocation4 [shape = 's32[1]{0}', space=sflag, size = 0x4, scoped, tag = 'scoped memory for tpu_custom_call.1']
    #allocation5 [shape = 's32[1]{0}', space=sflag, size = 0x4, scoped, tag = 'scoped memory for tpu_custom_call.1']
    #allocation6 [shape = 'u8[262144]{0}', space=vmem, size = 0x40000, scoped, tag = 'input window, operand 1, single buffered']
    #allocation7 [shape = 's32[1]{0}', space=sflag, size = 0x4, scoped, tag = 'scoped memory for tpu_custom_call.1']
    #allocation8 [shape = 'u8[2048]{0}', space=vmem, size = 0x800, scoped, tag = 'input window, operand 2, single buffered']
    #allocation9 [shape = 'u8[4096]{0}', space=vmem, size = 0x1000, scoped, tag = 'input window, operand 3, single buffered']
    #allocation10 [shape = 's32[1]{0}', space=sflag, size = 0x4, scoped, tag = 'scoped memory for tpu_custom_call.1']
    #allocation11 [shape = 'u8[4096]{0}', space=vmem, size = 0x1000, scoped, tag = 'output window, operand 0, single buffered']
    #allocation12 [shape = 'u8[4096]{0}', space=vmem, size = 0x1000, scoped, tag = 'output window, operand 1, single buffered']
    #allocation13 [shape = 's32[1]{0}', space=sflag, size = 0x4, scoped, tag = 'scoped memory for tpu_custom_call.1']
    %11 = vsyncpa [#allocation4], 0
    %12 = vsyncpa [#allocation7], 0
    %13 = vsyncpa [#allocation10], 0
    %14 = vsyncpa [#allocation5], 0
    %15 = vsyncpa [#allocation13], 0
    // Predicated region
    $region2: #{tpu_custom_call.1} parent=1 // pred_check
      _
    $region3: #{tpu_custom_call.1} parent=1 // pred_check_branch
      %17 = sbr.rel (0) target = $region5
    $region4: #{tpu_custom_call.1} parent=1 // pred_region
      %s19 = ssub.s32 128, 128
      %20 = vsyncadd [#allocation4], %s19
      %s22 = sshll.u32 [#allocation3], 4
      %s23 = int_to_ptr.vmem [resolvable:$true] %s22
      %25 = dma.hbm_to_vmem [thread:$0]  %s0, 128, %s23, [#allocation4]
    $region5: #{tpu_custom_call.1} parent=1 // pred_fallthru
      _
    // Predicated region
    $region6: #{tpu_custom_call.1} parent=1 // pred_check
      _
    $region7: #{tpu_custom_call.1} parent=1 // pred_check_branch
      %27 = sbr.rel (0) target = $region9
    $region8: #{tpu_custom_call.1} parent=1 // pred_region
      %s29 = ssub.s32 8192, 8192
      %30 = vsyncadd [#allocation7], %s29
      %s31 = sshll.u32 [#allocation6], 4
      %s32 = int_to_ptr.vmem [resolvable:$true] %s31
      %37 = dma.hbm_to_vmem [thread:$0]  %s1, 8192, %s32, [#allocation7], 512, 512, 32
    $region9: #{tpu_custom_call.1} parent=1 // pred_fallthru
      _
    // Predicated region
    $region10: #{tpu_custom_call.1} parent=1 // pred_check
      _
    $region11: #{tpu_custom_call.1} parent=1 // pred_check_branch
      %39 = sbr.rel (0) target = $region13
    $region12: #{tpu_custom_call.1} parent=1 // pred_region
      %s41 = ssub.s32 64, 64
      %42 = vsyncadd [#allocation7], %s41
      %s44 = sshll.u32 [#allocation8], 4
      %s45 = int_to_ptr.vmem [resolvable:$true] %s44
      %47 = dma.hbm_to_vmem [thread:$0]  %s2, 64, %s45, [#allocation7]
    $region13: #{tpu_custom_call.1} parent=1 // pred_fallthru
      _
    // Predicated region
    $region14: #{tpu_custom_call.1} parent=1 // pred_check
      _
    $region15: #{tpu_custom_call.1} parent=1 // pred_check_branch
      %49 = sbr.rel (0) target = $region17
    $region16: #{tpu_custom_call.1} parent=1 // pred_region
      %s51 = ssub.s32 128, 128
      %52 = vsyncadd [#allocation10], %s51
      %s54 = sshll.u32 [#allocation9], 4
      %s55 = int_to_ptr.vmem [resolvable:$true] %s54
      %57 = dma.hbm_to_vmem [thread:$0]  %s3, 128, %s55, [#allocation10]
    $region17: #{tpu_custom_call.1} parent=1 // pred_fallthru
      _
    // Predicated region
    $region18: #{tpu_custom_call.1} parent=1 // pred_check
      _
    $region19: #{tpu_custom_call.1} parent=1 // pred_check_branch
      %59 = sbr.rel (0) target = $region21
    $region20: #{tpu_custom_call.1} parent=1 // pred_region
      %60 = dma.done [#allocation4], 128
    $region21: #{tpu_custom_call.1} parent=1 // pred_fallthru
      _
    // Predicated region
    $region22: #{tpu_custom_call.1} parent=1 // pred_check
      _
    $region23: #{tpu_custom_call.1} parent=1 // pred_check_branch
      %62 = sbr.rel (0) target = $region25
    $region24: #{tpu_custom_call.1} parent=1 // pred_region
      %63 = dma.done [#allocation7], 8192
    $region25: #{tpu_custom_call.1} parent=1 // pred_fallthru
      _
    // Predicated region
    $region26: #{tpu_custom_call.1} parent=1 // pred_check
      _
    $region27: #{tpu_custom_call.1} parent=1 // pred_check_branch
      %65 = sbr.rel (0) target = $region29
    $region28: #{tpu_custom_call.1} parent=1 // pred_region
      %66 = dma.done [#allocation7], 64
    $region29: #{tpu_custom_call.1} parent=1 // pred_fallthru
      _
    // Predicated region
    $region30: #{tpu_custom_call.1} parent=1 // pred_check
      _
    $region31: #{tpu_custom_call.1} parent=1 // pred_check_branch
      %68 = sbr.rel (0) target = $region33
    $region32: #{tpu_custom_call.1} parent=1 // pred_region
      %69 = dma.done [#allocation10], 128
    $region33: #{tpu_custom_call.1} parent=1 // pred_fallthru
      _
    %v70 = vld [vmem:[#allocation3] sm:$0xff]
    %v71 = vld [vmem:[#allocation6] sm:$0xff]
    %v72 = vld [vmem:[#allocation6 + $0x8] sm:$0xff]
    %v73 = vld [vmem:[#allocation6 + $0x10] sm:$0xff]
    %v74 = vld [vmem:[#allocation6 + $0x18] sm:$0xff]
    %v75 = vld [vmem:[#allocation6 + $0x20] sm:$0xff]
    %v76 = vld [vmem:[#allocation6 + $0x28] sm:$0xff]
    %v77 = vld [vmem:[#allocation6 + $0x30] sm:$0xff]
    %v78 = vld [vmem:[#allocation6 + $0x38] sm:$0xff]
    %v79 = vld [vmem:[#allocation6 + $0x40] sm:$0xff]
    %v80 = vld [vmem:[#allocation6 + $0x48] sm:$0xff]
    %v81 = vld [vmem:[#allocation6 + $0x50] sm:$0xff]
    %v82 = vld [vmem:[#allocation6 + $0x58] sm:$0xff]
    %v83 = vld [vmem:[#allocation6 + $0x60] sm:$0xff]
    %v84 = vld [vmem:[#allocation6 + $0x68] sm:$0xff]
    %v85 = vld [vmem:[#allocation6 + $0x70] sm:$0xff]
    %v86 = vld [vmem:[#allocation6 + $0x78] sm:$0xff]
    %v87 = vld [vmem:[#allocation6 + $0x80] sm:$0xff]
    %v88 = vld [vmem:[#allocation6 + $0x88] sm:$0xff]
    %v89 = vld [vmem:[#allocation6 + $0x90] sm:$0xff]
    %v90 = vld [vmem:[#allocation6 + $0x98] sm:$0xff]
    %v91 = vld [vmem:[#allocation6 + $0xa0] sm:$0xff]
    %v92 = vld [vmem:[#allocation6 + $0xa8] sm:$0xff]
    %v93 = vld [vmem:[#allocation6 + $0xb0] sm:$0xff]
    %v94 = vld [vmem:[#allocation6 + $0xb8] sm:$0xff]
    %v95 = vld [vmem:[#allocation6 + $0xc0] sm:$0xff]
    %v96 = vld [vmem:[#allocation6 + $0xc8] sm:$0xff]
    %v97 = vld [vmem:[#allocation6 + $0xd0] sm:$0xff]
    %v98 = vld [vmem:[#allocation6 + $0xd8] sm:$0xff]
    %v99 = vld [vmem:[#allocation6 + $0xe0] sm:$0xff]
    %v100 = vld [vmem:[#allocation6 + $0xe8] sm:$0xff]
    %v101 = vld [vmem:[#allocation6 + $0xf0] sm:$0xff]
    %v102 = vld [vmem:[#allocation6 + $0xf8] sm:$0xff]
    %v103 = vld [vmem:[#allocation6 + $0x100] sm:$0xff]
    %v104 = vld [vmem:[#allocation6 + $0x108] sm:$0xff]
    %v105 = vld [vmem:[#allocation6 + $0x110] sm:$0xff]
    %v106 = vld [vmem:[#allocation6 + $0x118] sm:$0xff]
    %v107 = vld [vmem:[#allocation6 + $0x120] sm:$0xff]
    %v108 = vld [vmem:[#allocation6 + $0x128] sm:$0xff]
    %v109 = vld [vmem:[#allocation6 + $0x130] sm:$0xff]
    %v110 = vld [vmem:[#allocation6 + $0x138] sm:$0xff]
    %v111 = vld [vmem:[#allocation6 + $0x140] sm:$0xff]
    %v112 = vld [vmem:[#allocation6 + $0x148] sm:$0xff]
    %v113 = vld [vmem:[#allocation6 + $0x150] sm:$0xff]
    %v114 = vld [vmem:[#allocation6 + $0x158] sm:$0xff]
    %v115 = vld [vmem:[#allocation6 + $0x160] sm:$0xff]
    %v116 = vld [vmem:[#allocation6 + $0x168] sm:$0xff]
    %v117 = vld [vmem:[#allocation6 + $0x170] sm:$0xff]
    %v118 = vld [vmem:[#allocation6 + $0x178] sm:$0xff]
    %v119 = vld [vmem:[#allocation6 + $0x180] sm:$0xff]
    %v120 = vld [vmem:[#allocation6 + $0x188] sm:$0xff]
    %v121 = vld [vmem:[#allocation6 + $0x190] sm:$0xff]
    %v122 = vld [vmem:[#allocation6 + $0x198] sm:$0xff]
    %v123 = vld [vmem:[#allocation6 + $0x1a0] sm:$0xff]
    %v124 = vld [vmem:[#allocation6 + $0x1a8] sm:$0xff]
    %v125 = vld [vmem:[#allocation6 + $0x1b0] sm:$0xff]
    %v126 = vld [vmem:[#allocation6 + $0x1b8] sm:$0xff]
    %v127 = vld [vmem:[#allocation6 + $0x1c0] sm:$0xff]
    %v128 = vld [vmem:[#allocation6 + $0x1c8] sm:$0xff]
    %v129 = vld [vmem:[#allocation6 + $0x1d0] sm:$0xff]
    %v130 = vld [vmem:[#allocation6 + $0x1d8] sm:$0xff]
    %v131 = vld [vmem:[#allocation6 + $0x1e0] sm:$0xff]
    %v132 = vld [vmem:[#allocation6 + $0x1e8] sm:$0xff]
    %v133 = vld [vmem:[#allocation6 + $0x1f0] sm:$0xff]
    %v134 = vld [vmem:[#allocation6 + $0x1f8] sm:$0xff]
    %135 = vmatprep.subr.mxu0 %v132
    %136 = vmatpush1.msra.mxu0 %v131
    %137 = vmatprep.subr.mxu0 %v128
    %138 = vmatpush1.msra.mxu0 %v127
    %139 = vmatprep.subr.mxu0 %v124
    %140 = vmatpush1.msra.mxu0 %v123
    %141 = vmatprep.subr.mxu0 %v120
    %142 = vmatpush1.msra.mxu0 %v119
    %143 = vmatprep.subr.mxu0 %v116
    %144 = vmatpush1.msra.mxu0 %v115
    %145 = vmatprep.subr.mxu0 %v112
    %146 = vmatpush1.msra.mxu0 %v111
    %147 = vmatprep.subr.mxu0 %v108
    %148 = vmatpush1.msra.mxu0 %v107
    %149 = vmatprep.subr.mxu0 %v104
    %150 = vmatpush1.msra.mxu0 %v103
    %151 = vmatprep.subr.mxu0 %v100
    %152 = vmatpush1.msra.mxu0 %v99
    %153 = vmatprep.subr.mxu0 %v96
    %154 = vmatpush1.msra.mxu0 %v95
    %155 = vmatprep.subr.mxu0 %v92
    %156 = vmatpush1.msra.mxu0 %v91
    %157 = vmatprep.subr.mxu0 %v88
    %158 = vmatpush1.msra.mxu0 %v87
    %159 = vmatprep.subr.mxu0 %v84
    %160 = vmatpush1.msra.mxu0 %v83
    %161 = vmatprep.subr.mxu0 %v80
    %162 = vmatpush1.msra.mxu0 %v79
    %163 = vmatprep.subr.mxu0 %v76
    %164 = vmatpush1.msra.mxu0 %v75
    %165 = vmatprep.subr.mxu0 %v72
    %166 = vmatpush1.msra.mxu0 %v71
    %167 = vmatprep.subr.mxu0 0.0
    %168 = vmatpush2.msra.mxu0 0.0
    %169 = vmatprep.subr.mxu0 0.0
    %170 = vmatpush2.msra.mxu0 0.0
    %171 = vmatprep.subr.mxu0 0.0
    %172 = vmatpush2.msra.mxu0 0.0
    %173 = vmatprep.subr.mxu0 0.0
    %174 = vmatpush2.msra.mxu0 0.0
    %175 = vmatprep.subr.mxu0 0.0
    %176 = vmatpush2.msra.mxu0 0.0
    %177 = vmatprep.subr.mxu0 0.0
    %178 = vmatpush2.msra.mxu0 0.0
    %179 = vmatprep.subr.mxu0 0.0
    %180 = vmatpush2.msra.mxu0 0.0
    %181 = vmatprep.subr.mxu0 0.0
    %182 = vmatpush2.msra.mxu0 0.0
    %183 = vmatprep.subr.mxu0 0.0
    %184 = vmatpush2.msra.mxu0 0.0
    %185 = vmatprep.subr.mxu0 0.0
    %186 = vmatpush2.msra.mxu0 0.0
    %187 = vmatprep.subr.mxu0 0.0
    %188 = vmatpush2.msra.mxu0 0.0
    %189 = vmatprep.subr.mxu0 0.0
    %190 = vmatpush2.msra.mxu0 0.0
    %191 = vmatprep.subr.mxu0 0.0
    %192 = vmatpush2.msra.mxu0 0.0
    %193 = vmatprep.subr.mxu0 0.0
    %194 = vmatpush2.msra.mxu0 0.0
    %195 = vmatprep.subr.mxu0 0.0
    %196 = vmatpush2.msra.mxu0 0.0
    %197 = vmatprep.subr.mxu0 0.0
    %198 = vmatpush2.msra.mxu0 0.0
    %199 = vmatprep.mubr.f32.mxu0 0.0
    %200 = vmatmul.mubr.f32.gmra.mxu0 %v70
    %v201 = vpop.f32.mrf.mxu0
    %v202 = vadd.f32 0.0, %v201
    %v203 = vpop.f32.mrf.mxu0
    %v204 = vadd.f32 0.0, %v203
    %205 = vdwg.mxu0
    %206 = vmatprep.subr.mxu0 %v134
    %207 = vmatpush1.msra.mxu0 %v133
    %208 = vmatprep.subr.mxu0 %v130
    %209 = vmatpush1.msra.mxu0 %v129
    %210 = vmatprep.subr.mxu0 %v126
    %211 = vmatpush1.msra.mxu0 %v125
    %212 = vmatprep.subr.mxu0 %v122
    %213 = vmatpush1.msra.mxu0 %v121
    %214 = vmatprep.subr.mxu0 %v118
    %215 = vmatpush1.msra.mxu0 %v117
    %216 = vmatprep.subr.mxu0 %v114
    %217 = vmatpush1.msra.mxu0 %v113
    %218 = vmatprep.subr.mxu0 %v110
    %219 = vmatpush1.msra.mxu0 %v109
    %220 = vmatprep.subr.mxu0 %v106
    %221 = vmatpush1.msra.mxu0 %v105
    %222 = vmatprep.subr.mxu0 %v102
    %223 = vmatpush1.msra.mxu0 %v101
    %224 = vmatprep.subr.mxu0 %v98
    %225 = vmatpush1.msra.mxu0 %v97
    %226 = vmatprep.subr.mxu0 %v94
    %227 = vmatpush1.msra.mxu0 %v93
    %228 = vmatprep.subr.mxu0 %v90
    %229 = vmatpush1.msra.mxu0 %v89
    %230 = vmatprep.subr.mxu0 %v86
    %231 = vmatpush1.msra.mxu0 %v85
    %232 = vmatprep.subr.mxu0 %v82
    %233 = vmatpush1.msra.mxu0 %v81
    %234 = vmatprep.subr.mxu0 %v78
    %235 = vmatpush1.msra.mxu0 %v77
    %236 = vmatprep.subr.mxu0 %v74
    %237 = vmatpush1.msra.mxu0 %v73
    %238 = vmatprep.subr.mxu0 0.0
    %239 = vmatpush2.msra.mxu0 0.0
    %240 = vmatprep.subr.mxu0 0.0
    %241 = vmatpush2.msra.mxu0 0.0
    %242 = vmatprep.subr.mxu0 0.0
    %243 = vmatpush2.msra.mxu0 0.0
    %244 = vmatprep.subr.mxu0 0.0
    %245 = vmatpush2.msra.mxu0 0.0
    %246 = vmatprep.subr.mxu0 0.0
    %247 = vmatpush2.msra.mxu0 0.0
    %248 = vmatprep.subr.mxu0 0.0
    %249 = vmatpush2.msra.mxu0 0.0
    %250 = vmatprep.subr.mxu0 0.0
    %251 = vmatpush2.msra.mxu0 0.0
    %252 = vmatprep.subr.mxu0 0.0
    %253 = vmatpush2.msra.mxu0 0.0
    %254 = vmatprep.subr.mxu0 0.0
    %255 = vmatpush2.msra.mxu0 0.0
    %256 = vmatprep.subr.mxu0 0.0
    %257 = vmatpush2.msra.mxu0 0.0
    %258 = vmatprep.subr.mxu0 0.0
    %259 = vmatpush2.msra.mxu0 0.0
    %260 = vmatprep.subr.mxu0 0.0
    %261 = vmatpush2.msra.mxu0 0.0
    %262 = vmatprep.subr.mxu0 0.0
    %263 = vmatpush2.msra.mxu0 0.0
    %264 = vmatprep.subr.mxu0 0.0
    %265 = vmatpush2.msra.mxu0 0.0
    %266 = vmatprep.subr.mxu0 0.0
    %267 = vmatpush2.msra.mxu0 0.0
    %268 = vmatprep.subr.mxu0 0.0
    %269 = vmatpush2.msra.mxu0 0.0
    %270 = vmatprep.mubr.f32.mxu0 0.0
    %271 = vmatmul.mubr.f32.gmra.mxu0 %v70
    %v272 = vpop.f32.mrf.mxu0
    %v273 = vadd.f32 0.0, %v272
    %v274 = vpop.f32.mrf.mxu0
    %v275 = vadd.f32 0.0, %v274
    %276 = vdwg.mxu0
    %p277 = scmp.eq.s32.totalorder 0, 0
    // Predicated region
    $region34: #{tpu_custom_call.1} parent=1 // pred_check
      %p278 = pneg %p277
    $region35: #{tpu_custom_call.1} parent=1 // pred_check_branch
      %280 = sbr.rel (%p278) target = $region37
    $region36: #{tpu_custom_call.1} parent=1 // pred_region
      %v281 = vld [vmem:[#allocation8] sm:$0xf]
      %v283 = vlaneseq
      %v284 = vshrl.u32 %v283, 7
      %v285 = vsub.s32 0, %v284
      %v286 = vrot.slane %v281, %v285
      %v287 = vlaneseq
      %v288 = vshrl.u32 %v287, 7
      %v289 = vsub.s32 1, %v288
      %v290 = vrot.slane %v281, %v289
      %v291 = vlaneseq
      %v292 = vshrl.u32 %v291, 7
      %v293 = vsub.s32 2, %v292
      %v294 = vrot.slane %v281, %v293
      %v295 = vlaneseq
      %v296 = vshrl.u32 %v295, 7
      %v297 = vsub.s32 3, %v296
      %v298 = vrot.slane %v281, %v297
      %v303 = vadd.f32 %v202, %v286
      %v304 = vadd.f32 %v204, %v290
      %v305 = vadd.f32 %v273, %v294
      %v306 = vadd.f32 %v275, %v298
      %307 = vst [vmem:[#allocation2] sm:$0xff] %v303
      %308 = vst [vmem:[#allocation2 + $0x8] sm:$0xff] %v304
      %309 = vst [vmem:[#allocation2 + $0x10] sm:$0xff] %v305
      %310 = vst [vmem:[#allocation2 + $0x18] sm:$0xff] %v306
    $region37: #{tpu_custom_call.1} parent=1 // pred_fallthru
      _
    %p311 = scmp.gt.s32.totalorder 0, 0
    // Predicated region
    $region38: #{tpu_custom_call.1} parent=1 // pred_check
      %p312 = pneg %p311
    $region39: #{tpu_custom_call.1} parent=1 // pred_check_branch
      %314 = sbr.rel (%p312) target = $region41
    $region40: #{tpu_custom_call.1} parent=1 // pred_region
      %v315 = vld [vmem:[#allocation2] sm:$0xff]
      %v316 = vld [vmem:[#allocation2 + $0x8] sm:$0xff]
      %v317 = vld [vmem:[#allocation2 + $0x10] sm:$0xff]
      %v318 = vld [vmem:[#allocation2 + $0x18] sm:$0xff]
      %v319 = vadd.f32 %v315, %v202
      %v320 = vadd.f32 %v316, %v204
      %v321 = vadd.f32 %v317, %v273
      %v322 = vadd.f32 %v318, %v275
      %323 = vst [vmem:[#allocation2] sm:$0xff] %v319
      %324 = vst [vmem:[#allocation2 + $0x8] sm:$0xff] %v320
      %325 = vst [vmem:[#allocation2 + $0x10] sm:$0xff] %v321
      %326 = vst [vmem:[#allocation2 + $0x18] sm:$0xff] %v322
    $region41: #{tpu_custom_call.1} parent=1 // pred_fallthru
      _
    // Predicated region
    $region42: #{tpu_custom_call.1} parent=1 // pred_check
      %p327 = pneg %p277
    $region43: #{tpu_custom_call.1} parent=1 // pred_check_branch
      %329 = sbr.rel (%p327) target = $region45
    $region44: #{tpu_custom_call.1} parent=1 // pred_region
      %v330 = vld [vmem:[#allocation2] sm:$0xff]
      %v331 = vld [vmem:[#allocation2 + $0x8] sm:$0xff]
      %v332 = vld [vmem:[#allocation2 + $0x10] sm:$0xff]
      %v333 = vld [vmem:[#allocation2 + $0x18] sm:$0xff]
      %v334 = vxor.u32 %v330, 2147483648
      %v335 = vmul.f32 %v334, 1.442695
      %v336 = vpow.pop %v335
      %v337 = vadd.f32 %v336, 1.0
      %v338 = vrcp.pop %v337
      %v339 = vmul.f32 1.0, %v338
      %v340 = vxor.u32 %v331, 2147483648
      %v341 = vmul.f32 %v340, 1.442695
      %v342 = vpow.pop %v341
      %v343 = vadd.f32 %v342, 1.0
      %v344 = vrcp.pop %v343
      %v345 = vmul.f32 1.0, %v344
      %v346 = vtanh.pop %v332
      %v347 = vxor.u32 %v333, 2147483648
      %v348 = vmul.f32 %v347, 1.442695
      %v349 = vpow.pop %v348
      %v350 = vadd.f32 %v349, 1.0
      %v351 = vrcp.pop %v350
      %v352 = vmul.f32 1.0, %v351
      %v353 = vld [vmem:[#allocation9] sm:$0xff]
      %v354 = vmul.f32 %v345, %v353
      %v355 = vmul.f32 %v339, %v346
      %v356 = vadd.f32 %v354, %v355
      %v357 = vtanh.pop %v356
      %v358 = vmul.f32 %v357, %v352
      %359 = vst [vmem:[#allocation11] sm:$0xff] %v358
      %360 = vst [vmem:[#allocation12] sm:$0xff] %v356
    $region45: #{tpu_custom_call.1} parent=1 // pred_fallthru
      _
    // Predicated region
    $region46: #{tpu_custom_call.1} parent=1 // pred_check
      _
    $region47: #{tpu_custom_call.1} parent=1 // pred_check_branch
      %362 = sbr.rel (0) target = $region49
    $region48: #{tpu_custom_call.1} parent=1 // pred_region
      %s364 = ssub.s32 128, 128
      %365 = vsyncadd [#allocation5], %s364
      %s367 = sshll.u32 [#allocation11], 4
      %s368 = int_to_ptr.vmem [resolvable:$true] %s367
      %370 = dma.vmem_to_hbm [thread:$0]  %s368, 128, %s4, [#allocation5]
    $region49: #{tpu_custom_call.1} parent=1 // pred_fallthru
      _
    // Predicated region
    $region50: #{tpu_custom_call.1} parent=1 // pred_check
      _
    $region51: #{tpu_custom_call.1} parent=1 // pred_check_branch
      %372 = sbr.rel (0) target = $region53
    $region52: #{tpu_custom_call.1} parent=1 // pred_region
      %s374 = ssub.s32 128, 128
      %375 = vsyncadd [#allocation13], %s374
      %s377 = sshll.u32 [#allocation12], 4
      %s378 = int_to_ptr.vmem [resolvable:$true] %s377
      %380 = dma.vmem_to_hbm [thread:$0]  %s378, 128, %s5, [#allocation13]
    $region53: #{tpu_custom_call.1} parent=1 // pred_fallthru
      _
    // Predicated region
    $region54: #{tpu_custom_call.1} parent=1 // pred_check
      _
    $region55: #{tpu_custom_call.1} parent=1 // pred_check_branch
      %382 = sbr.rel (0) target = $region57
    $region56: #{tpu_custom_call.1} parent=1 // pred_region
      %383 = dma.done [#allocation5], 128
    $region57: #{tpu_custom_call.1} parent=1 // pred_fallthru
      _
    // Predicated region
    $region58: #{tpu_custom_call.1} parent=1 // pred_check
      _
    $region59: #{tpu_custom_call.1} parent=1 // pred_check_branch
      %385 = sbr.rel (0) target = $region61
    $region60: #{tpu_custom_call.1} parent=1 // pred_region
      %386 = dma.done [#allocation13], 128
    $region61: #{tpu_custom_call.1} parent=1 // pred_fallthru
      _
    %387 = vsyncpa [#allocation4], 1
    %388 = vsyncpa [#allocation7], 1
    %389 = vsyncpa [#allocation10], 1
    %390 = vsyncpa [#allocation5], 1
    %391 = vsyncpa [#allocation13], 1

</llo_original>
